<compile_context>
chip_gen: v7x
topology: tpu7x:2x2x1
jax: 0.10.0
libtpu: 0.0.40
codegen_flags: <defaults>
</compile_context>

<pallas_src>
import jax
import jax.numpy as jnp
from jax.experimental import pallas as pl
from jax.experimental.pallas import tpu as pltpu

LANE = 128
SUBLANE = 8


def _ssd_kernel(x_ref, y_ref, o_ref):
    # x_ref, y_ref: (tile_rows, 128) tiles (native dtype) in VMEM
    # o_ref:        (1, 8, 128) f32 accumulator block, resident across the
    #               inner ("arbitrary") grid axis.
    i = pl.program_id(1)

    @pl.when(i == 0)
    def _():
        o_ref[...] = jnp.zeros_like(o_ref)

    x = x_ref[...].astype(jnp.float32)
    y = y_ref[...].astype(jnp.float32)
    d = x - y
    sq = d * d
    # Partial reduce over the leading axis only: (tr,128)->(tr//8,8,128) is a
    # layout-preserving reshape and the axis-0 sum is plain elementwise vreg
    # adds (no XLU cross-lane traffic in the steady state).
    part = sq.reshape(-1, SUBLANE, LANE).sum(axis=0)  # (8, 128) f32
    o_ref[...] = o_ref[...] + part[None]


def dwt_l2_mse(x_ll, y_ll, *, tile_rows=1024):
    """Pallas equivalent of DWTL2.forward: scalar MSE(X_ll, Y_ll)."""
    assert x_ll.shape == y_ll.shape, "X_ll and Y_ll must have identical shapes"
    n = x_ll.size

    xf = x_ll.reshape(-1)
    yf = y_ll.reshape(-1)

    rows = n // LANE
    # Row alignment so each tile reshapes exactly into (tr//8, 8, 128) vregs
    # (and respects sub-32-bit sublane packing for bf16 / int8 inputs).
    itemsize = jnp.dtype(x_ll.dtype).itemsize
    row_align = SUBLANE * max(1, 4 // max(itemsize, 1))  # 8 f32, 16 bf16, 32 i8
    tr = (min(tile_rows, rows) // row_align) * row_align
    bulk_rows = (rows // tr) * tr if tr > 0 else 0
    bulk = bulk_rows * LANE

    # Tail: fewer than tile_rows*128 + 128 elements -> negligible, plain JAX.
    if bulk < n:
        xt = xf[bulk:].astype(jnp.float32)
        yt = yf[bulk:].astype(jnp.float32)
        tail_ssd = jnp.sum((xt - yt) ** 2)
    else:
        tail_ssd = jnp.float32(0.0)

    if bulk_rows == 0:
        # Input too small for one aligned tile; everything handled above.
        return tail_ssd / jnp.float32(n)

    # Full-extent slice is a no-op when n is already 128*tile-aligned (the
    # common case); only an unaligned tail triggers a bulk-sized copy.
    x2 = xf[:bulk].reshape(bulk_rows, LANE)
    y2 = yf[:bulk].reshape(bulk_rows, LANE)

    grid_len = bulk_rows // tr
    # Two independent partial sums -> the "parallel" axis can be sharded
    # across TensorCores on v7x; serialized (and still correct) elsewhere.
    nsplit = 2 if (grid_len >= 2 and grid_len % 2 == 0) else 1
    steps = grid_len // nsplit

    out = pl.pallas_call(
        _ssd_kernel,
        out_shape=jax.ShapeDtypeStruct((nsplit, SUBLANE, LANE), jnp.float32),
        grid_spec=pltpu.PrefetchScalarGridSpec(
            num_scalar_prefetch=0,
            grid=(nsplit, steps),
            in_specs=[
                pl.BlockSpec((tr, LANE), lambda c, i: (c * steps + i, 0)),
                pl.BlockSpec((tr, LANE), lambda c, i: (c * steps + i, 0)),
            ],
            out_specs=pl.BlockSpec((1, SUBLANE, LANE), lambda c, i: (c, 0, 0)),
        ),
        compiler_params=pltpu.CompilerParams(
            dimension_semantics=("parallel", "arbitrary")
        ),
    )(x2, y2)

    total = jnp.sum(out) + tail_ssd
    return total / jnp.float32(n)


if __name__ == "__main__":
    # NOTE: DWTL2.__init__ builds an HpfDWT sub-module, but forward() never
    # uses it — the forward pass is exactly MSELoss(X_ll, Y_ll), so there are
    # no learned parameters to initialize for this kernel.
    key = jax.random.PRNGKey(0)
    k1, k2 = jax.random.split(key)
    shape = (2, 4, 16, 16)  # NCHW, small example consistent with DWT LL bands
    x_ll = jax.random.normal(k1, shape, dtype=jnp.float32)
    y_ll = jax.random.normal(k2, shape, dtype=jnp.float32)

    score = dwt_l2_mse(x_ll, y_ll)
    score = jax.block_until_ready(score)

    # Reference check against plain JAX MSE.
    ref = jnp.mean((x_ll - y_ll) ** 2)
    assert jnp.allclose(score, ref, rtol=1e-5, atol=1e-6), (score, ref)

    print("KERNEL_OK")
</pallas_src>

<mosaic_0001>
module attributes {stable_mosaic.version = 11 : i64} {
  func.func @_ssd_kernel(%arg0: i32, %arg1: i32, %arg2: memref<16x128xf32, #tpu.memory_space<vmem>>, %arg3: memref<16x128xf32, #tpu.memory_space<vmem>>, %arg4: memref<1x8x128xf32, #tpu.memory_space<vmem>>) attributes {dimension_semantics = [#tpu.dimension_semantics<parallel>, #tpu.dimension_semantics<arbitrary>], iteration_bounds = array<i64: 1, 1>, scalar_prefetch = 0 : i64, scratch_operands = 0 : i64, tpu.core_type = #tpu.core_type<tc>, window_params = [{transform_indices = @transform_0, window_bounds = array<i64: 16, 128>}, {transform_indices = @transform_1, window_bounds = array<i64: 16, 128>}, {transform_indices = @transform_2, window_bounds = array<i64: 1, 8, 128>}]} {
    %c0_i32 = arith.constant 0 : i32
    %0 = arith.cmpi eq, %arg1, %c0_i32 : i32
    %1 = arith.extui %0 : i1 to i32
    %c0_i32_0 = arith.constant 0 : i32
    %2 = arith.cmpi ne, %1, %c0_i32_0 : i32
    scf.if %2 {
      %cst_10 = arith.constant 0.000000e+00 : f32
      %13 = vector.broadcast %cst_10 : f32 to vector<1x8x128xf32>
      %c0_11 = arith.constant 0 : index
      %c0_12 = arith.constant 0 : index
      %c0_13 = arith.constant 0 : index
      %14 = vector.load %arg4[%c0_11, %c0_12, %c0_13] : memref<1x8x128xf32, #tpu.memory_space<vmem>>, vector<1x8x128xf32>
      tpu.vector_store %arg4[%c0_11, %c0_12, %c0_13], %13 {strides = array<i32>} : memref<1x8x128xf32, #tpu.memory_space<vmem>>, vector<1x8x128xf32>,
    } else {
    }
    %c0 = arith.constant 0 : index
    %c0_1 = arith.constant 0 : index
    %3 = vector.load %arg2[%c0, %c0_1] : memref<16x128xf32, #tpu.memory_space<vmem>>, vector<16x128xf32>
    %c0_2 = arith.constant 0 : index
    %c0_3 = arith.constant 0 : index
    %4 = vector.load %arg3[%c0_2, %c0_3] : memref<16x128xf32, #tpu.memory_space<vmem>>, vector<16x128xf32>
    %5 = arith.subf %3, %4 : vector<16x128xf32>
    %6 = arith.mulf %5, %5 : vector<16x128xf32>
    %7 = vector.shape_cast %6 : vector<16x128xf32> to vector<2x8x128xf32>
    %cst = arith.constant dense<0.000000e+00> : vector<8x128xf32>
    %8 = vector.multi_reduction <add>, %7, %cst [0] : vector<2x8x128xf32> to vector<8x128xf32>
    %c0_4 = arith.constant 0 : index
    %c0_5 = arith.constant 0 : index
    %c0_6 = arith.constant 0 : index
    %9 = vector.load %arg4[%c0_4, %c0_5, %c0_6] : memref<1x8x128xf32, #tpu.memory_space<vmem>>, vector<1x8x128xf32>
    %10 = vector.shape_cast %8 : vector<8x128xf32> to vector<1x8x128xf32>
    %11 = arith.addf %9, %10 : vector<1x8x128xf32>
    %c0_7 = arith.constant 0 : index
    %c0_8 = arith.constant 0 : index
    %c0_9 = arith.constant 0 : index
    %12 = vector.load %arg4[%c0_7, %c0_8, %c0_9] : memref<1x8x128xf32, #tpu.memory_space<vmem>>, vector<1x8x128xf32>
    tpu.vector_store %arg4[%c0_7, %c0_8, %c0_9], %11 {strides = array<i32>} : memref<1x8x128xf32, #tpu.memory_space<vmem>>, vector<1x8x128xf32>,
    return
  }
  func.func @transform_0(%arg0: i32, %arg1: i32) -> (i32, i32) {
    %c1_i32 = arith.constant 1 : i32
    %0 = arith.muli %arg0, %c1_i32 : i32
    %1 = arith.addi %0, %arg1 : i32
    %c0_i32 = arith.constant 0 : i32
    %c0_i32_0 = arith.constant 0 : i32
    return %1, %c0_i32 : i32, i32
  }
  func.func @transform_1(%arg0: i32, %arg1: i32) -> (i32, i32) {
    %c1_i32 = arith.constant 1 : i32
    %0 = arith.muli %arg0, %c1_i32 : i32
    %1 = arith.addi %0, %arg1 : i32
    %c0_i32 = arith.constant 0 : i32
    %c0_i32_0 = arith.constant 0 : i32
    return %1, %c0_i32 : i32, i32
  }
  func.func @transform_2(%arg0: i32, %arg1: i32) -> (i32, i32, i32) {
    %c0_i32 = arith.constant 0 : i32
    %c0_i32_0 = arith.constant 0 : i32
    %c0_i32_1 = arith.constant 0 : i32
    return %arg0, %c0_i32, %c0_i32_0 : i32, i32, i32
  }
}

</mosaic_0001>

<llo_original>
// kernel: tpu_custom_call.1
$region0: #{tpu_custom_call.1}
  #allocation0 [shape = 'u32[]', space=smem, size = 0x4, offset = 0x4, fixed_abs, tag = 'smem constant byte address 0x4 - core index']
  #allocation1 [shape = 'u32[144,128]{1,0:T(1,128)}', space=vmem, size = 0x12000, scoped, tag = 'internal scratch']
  %s0 = inlined_call_operand.hbm [shape: f32[16,128], index: 0, kind: input, shape index: {}]
  %s1 = inlined_call_operand.hbm [shape: f32[16,128], index: 1, kind: input, shape index: {}]
  %s2 = inlined_call_operand.hbm [shape: f32[1,8,128], index: 2, kind: output, shape index: {}]
  %s3 = sld [smem:[#allocation0]]
  $region30: #{tpu_custom_call.1} parent=0
    _
  %s5 = ssub.s32 1, %s3
  %s6 = scalar_select 0, %s5, %s3
  $region1: #{tpu_custom_call.1} parent=0
    #allocation2 [shape = 'u8[8192]{0}', space=vmem, size = 0x2000, scoped, tag = 'input window, operand 0, single buffered']
    #allocation3 [shape = 's32[1]{0}', space=sflag, size = 0x4, scoped, tag = 'scoped memory for tpu_custom_call.1']
    #allocation4 [shape = 's32[1]{0}', space=sflag, size = 0x4, scoped, tag = 'scoped memory for tpu_custom_call.1']
    #allocation5 [shape = 'u8[8192]{0}', space=vmem, size = 0x2000, scoped, tag = 'input window, operand 1, single buffered']
    #allocation6 [shape = 's32[1]{0}', space=sflag, size = 0x4, scoped, tag = 'scoped memory for tpu_custom_call.1']
    #allocation7 [shape = 'u8[4096]{0}', space=vmem, size = 0x1000, scoped, tag = 'output window, operand 0, single buffered']
    %7 = vsyncpa [#allocation3], 0
    %8 = vsyncpa [#allocation6], 0
    %9 = vsyncpa [#allocation4], 0
    // Predicated region
    $region2: #{tpu_custom_call.1} parent=1 // pred_check
      _
    $region3: #{tpu_custom_call.1} parent=1 // pred_check_branch
      %11 = sbr.rel (0) target = $region5
    $region4: #{tpu_custom_call.1} parent=1 // pred_region
      %s12 = sadd.s32 0, 0
      %s13 = smul.u32 2, %s12
      %s15 = ssub.s32 256, 256
      %16 = vsyncadd [#allocation3], %s15
      %s17 = smul.addr %s13, 128
      %s18 = scalar_lea.hbm %s0, %s17
      %s19 = sshll.u32 [#allocation2], 4
      %s20 = int_to_ptr.vmem [resolvable:$true] %s19
      %25 = dma.hbm_to_vmem [thread:$0]  %s18, 256, %s20, [#allocation3], 128, 128, 8
    $region5: #{tpu_custom_call.1} parent=1 // pred_fallthru
      _
    // Predicated region
    $region6: #{tpu_custom_call.1} parent=1 // pred_check
      _
    $region7: #{tpu_custom_call.1} parent=1 // pred_check_branch
      %27 = sbr.rel (0) target = $region9
    $region8: #{tpu_custom_call.1} parent=1 // pred_region
      %s28 = sadd.s32 0, 0
      %s29 = smul.u32 2, %s28
      %s31 = ssub.s32 256, 256
      %32 = vsyncadd [#allocation6], %s31
      %s33 = smul.addr %s29, 128
      %s34 = scalar_lea.hbm %s1, %s33
      %s35 = sshll.u32 [#allocation5], 4
      %s36 = int_to_ptr.vmem [resolvable:$true] %s35
      %41 = dma.hbm_to_vmem [thread:$0]  %s34, 256, %s36, [#allocation6], 128, 128, 8
    $region9: #{tpu_custom_call.1} parent=1 // pred_fallthru
      _
    // Predicated region
    $region10: #{tpu_custom_call.1} parent=1 // pred_check
      _
    $region11: #{tpu_custom_call.1} parent=1 // pred_check_branch
      %43 = sbr.rel (0) target = $region13
    $region12: #{tpu_custom_call.1} parent=1 // pred_region
      %44 = dma.done [#allocation3], 256
    $region13: #{tpu_custom_call.1} parent=1 // pred_fallthru
      _
    // Predicated region
    $region14: #{tpu_custom_call.1} parent=1 // pred_check
      _
    $region15: #{tpu_custom_call.1} parent=1 // pred_check_branch
      %46 = sbr.rel (0) target = $region17
    $region16: #{tpu_custom_call.1} parent=1 // pred_region
      %47 = dma.done [#allocation6], 256
    $region17: #{tpu_custom_call.1} parent=1 // pred_fallthru
      _
    %s48 = sadd.s32 0, 0
    %s49 = smul.u32 2, %s48
    %s50 = sadd.s32 0, 0
    %s51 = smul.u32 2, %s50
    %p52 = scmp.eq.s32.totalorder 0, 0
    // Predicated region
    $region18: #{tpu_custom_call.1} parent=1 // pred_check
      %p53 = pneg %p52
    $region19: #{tpu_custom_call.1} parent=1 // pred_check_branch
      %55 = sbr.rel (%p53) target = $region21
    $region20: #{tpu_custom_call.1} parent=1 // pred_region
      %56 = vst [vmem:[#allocation7] sm:$0xff] 0.0
    $region21: #{tpu_custom_call.1} parent=1 // pred_fallthru
      _
    %v57 = vld [vmem:[#allocation2] sm:$0xff]
    %v58 = vld [vmem:[#allocation2 + $0x8] sm:$0xff]
    %v59 = vld [vmem:[#allocation5] sm:$0xff]
    %v60 = vld [vmem:[#allocation5 + $0x8] sm:$0xff]
    %v61 = vsub.f32 %v57, %v59
    %v62 = vsub.f32 %v58, %v60
    %v63 = vmul.f32 %v61, %v61
    %v64 = vmul.f32 %v62, %v62
    %v65 = vadd.f32 %v63, %v64
    %v66 = vld [vmem:[#allocation7] sm:$0xff]
    %v67 = vadd.f32 %v66, %v65
    %68 = vst [vmem:[#allocation7] sm:$0xff] %v67
    // Predicated region
    $region22: #{tpu_custom_call.1} parent=1 // pred_check
      _
    $region23: #{tpu_custom_call.1} parent=1 // pred_check_branch
      %70 = sbr.rel (0) target = $region25
    $region24: #{tpu_custom_call.1} parent=1 // pred_region
      %s72 = ssub.s32 128, 128
      %73 = vsyncadd [#allocation4], %s72
      %s75 = sshll.u32 [#allocation7], 4
      %s76 = int_to_ptr.vmem [resolvable:$true] %s75
      %78 = dma.vmem_to_hbm [thread:$0]  %s76, 128, %s2, [#allocation4]
    $region25: #{tpu_custom_call.1} parent=1 // pred_fallthru
      _
    // Predicated region
    $region26: #{tpu_custom_call.1} parent=1 // pred_check
      _
    $region27: #{tpu_custom_call.1} parent=1 // pred_check_branch
      %80 = sbr.rel (0) target = $region29
    $region28: #{tpu_custom_call.1} parent=1 // pred_region
      %81 = dma.done [#allocation4], 128
    $region29: #{tpu_custom_call.1} parent=1 // pred_fallthru
      _
    %82 = vsyncpa [#allocation3], 1
    %83 = vsyncpa [#allocation6], 1
    %84 = vsyncpa [#allocation4], 1

</llo_original>
